<compile_context>
chip_gen: v5e
topology: v5e:2x2
jax: 0.10.0
libtpu: 0.0.40
codegen_flags: <defaults>
</compile_context>

<pallas_src>
import math

import jax
import jax.numpy as jnp
from jax.experimental import pallas as pl
from jax.experimental.pallas import tpu as pltpu

DEG2RAD = math.pi / 180.0


def _round_up(x: int, m: int) -> int:
    return ((x + m - 1) // m) * m


def _make_chair_kernel(batch: int, tile_b: int, need_mask: bool):
    inv_norm = 1.0 / (10.0 * batch)  # folds the three means + /10 into one constant

    def kernel(hat_ref, true_ref, out_ref):
        i = pl.program_id(0)

        @pl.when(i == 0)
        def _init():
            out_ref[...] = jnp.zeros_like(out_ref)

        hat = hat_ref[...]    # (2, TB) f32: row 0 = phi, row 1 = theta (degrees)
        true = true_ref[...]  # (2, TB) f32

        # phi: plain squared error on raw values.
        phi_d = hat[0:1, :] - true[0:1, :]

        # theta: reproduce the original PyTorch asymmetry exactly:
        #   sin(theta_hat * pi/180) - sin(theta_true) * pi/180   (and same for cos)
        th_hat = hat[1:2, :] * DEG2RAD
        th_true = true[1:2, :]
        sin_d = jnp.sin(th_hat) - jnp.sin(th_true) * DEG2RAD
        cos_d = jnp.cos(th_hat) - jnp.cos(th_true) * DEG2RAD

        # Fused weighted sum of squares; rho term has weight 0.0 and is dropped.
        # TODO(synk): dropping 0.0 * rho_loss changes NaN/Inf propagation for
        # non-finite rho values relative to the PyTorch reference.
        w = 0.15 * (phi_d * phi_d) + 0.85 * (sin_d * sin_d + cos_d * cos_d)  # (1, TB)

        if need_mask:
            # Zero out the padded tail lanes (batch was padded up to a tile multiple).
            idx = jax.lax.broadcasted_iota(jnp.int32, (1, tile_b), 1) + i * tile_b
            w = jnp.where(idx < batch, w, 0.0)

        # Single cross-lane reduction per tile, accumulated into the resident
        # (1, 1) output block (constant index_map => no per-step HBM writeback).
        out_ref[...] += jnp.sum(w, keepdims=True)

        @pl.when(i == pl.num_programs(0) - 1)
        def _finalize():
            out_ref[...] = out_ref[...] * inv_norm

    return kernel


def chair_attribute_loss(label_hat: jax.Array, label_true: jax.Array,
                         *, tile_b: int = 2048) -> jax.Array:
    """Pallas implementation of ChairAttributeLoss.forward.

    label_hat, label_true: (B, C) with C >= 3. Returns a float32 scalar.
    """
    assert label_hat.shape == label_true.shape
    assert label_hat.ndim == 2 and label_hat.shape[1] >= 3
    B = label_hat.shape[0]

    # Only phi (col 0) and theta (col 1) contribute (rho weight is 0.0).
    # Slice before transposing so unused columns never reach HBM->VMEM DMA,
    # cast to f32 up-front, and go lane-dense: (attr, batch).
    hat_t = label_hat[:, :2].astype(jnp.float32).T     # (2, B)
    true_t = label_true[:, :2].astype(jnp.float32).T   # (2, B)

    tb = min(tile_b, _round_up(B, 128))                # lane-dense tile, mult of 128
    b_pad = _round_up(B, tb)
    need_mask = b_pad != B
    if need_mask:
        pad = b_pad - B
        hat_t = jnp.pad(hat_t, ((0, 0), (0, pad)))
        true_t = jnp.pad(true_t, ((0, 0), (0, pad)))

    kernel = _make_chair_kernel(B, tb, need_mask)

    out = pl.pallas_call(
        kernel,
        out_shape=jax.ShapeDtypeStruct((1, 1), jnp.float32),
        grid=(b_pad // tb,),
        in_specs=[
            pl.BlockSpec((2, tb), lambda i: (0, i)),
            pl.BlockSpec((2, tb), lambda i: (0, i)),
        ],
        out_specs=pl.BlockSpec((1, 1), lambda i: (0, 0)),
        compiler_params=pltpu.CompilerParams(
            dimension_semantics=("arbitrary",)),
    )(hat_t, true_t)
    return out[0, 0]


def _reference(label_hat, label_true):
    hat = label_hat.astype(jnp.float32)
    true = label_true.astype(jnp.float32)
    phi_loss = jnp.mean((hat[:, 0] - true[:, 0]) ** 2)
    rho_loss = jnp.mean((hat[:, 2] * DEG2RAD - true[:, 2] * DEG2RAD) ** 2)
    tls = jnp.mean((jnp.sin(hat[:, 1] * DEG2RAD) - jnp.sin(true[:, 1]) * DEG2RAD) ** 2)
    tlc = jnp.mean((jnp.cos(hat[:, 1] * DEG2RAD) - jnp.cos(true[:, 1]) * DEG2RAD) ** 2)
    theta_loss = tls + tlc
    return (0.15 * phi_loss + 0.85 * theta_loss + 0.0 * rho_loss) / 10.0


if __name__ == "__main__":
    key = jax.random.PRNGKey(0)
    k1, k2, k3, k4, k5 = jax.random.split(key, 5)

    # --- small case: B = 8, C = 3 ---
    B = 8
    phi_true = jnp.where(jax.random.bernoulli(k1, 0.5, (B,)), 30.0, 20.0)
    theta_true = jax.random.uniform(k2, (B,), minval=0.0, maxval=360.0)
    rho_true = jnp.full((B,), 1.5, dtype=jnp.float32)
    label_true = jnp.stack([phi_true, theta_true, rho_true], axis=1).astype(jnp.float32)
    noise = jax.random.normal(k3, (B, 3)) * jnp.array([2.0, 15.0, 0.1])
    label_hat = (label_true + noise).astype(jnp.float32)

    loss = jax.block_until_ready(chair_attribute_loss(label_hat, label_true))
    ref = _reference(label_hat, label_true)
    assert jnp.allclose(loss, ref, rtol=1e-5, atol=1e-6), (loss, ref)

    # --- larger case: exercises masking + multi-tile grid + extra columns ---
    B2, C2 = 300, 4
    lt2 = jax.random.uniform(k4, (B2, C2), minval=0.0, maxval=360.0).astype(jnp.float32)
    lh2 = (lt2 + jax.random.normal(k5, (B2, C2)) * 5.0).astype(jnp.float32)
    loss2 = jax.block_until_ready(chair_attribute_loss(lh2, lt2, tile_b=128))
    ref2 = _reference(lh2, lt2)
    assert jnp.allclose(loss2, ref2, rtol=1e-5, atol=1e-6), (loss2, ref2)

    print("KERNEL_OK")
</pallas_src>

<mosaic_0001>
module attributes {stable_mosaic.version = 11 : i64} {
  func.func @kernel(%arg0: i32, %arg1: memref<2x128xf32, #tpu.memory_space<vmem>>, %arg2: memref<2x128xf32, #tpu.memory_space<vmem>>, %arg3: memref<1x1xf32, #tpu.memory_space<vmem>>) attributes {dimension_semantics = [#tpu.dimension_semantics<arbitrary>], iteration_bounds = array<i64: 1>, scalar_prefetch = 0 : i64, scratch_operands = 0 : i64, tpu.core_type = #tpu.core_type<tc>, window_params = [{transform_indices = @transform_0, window_bounds = array<i64: 2, 128>}, {transform_indices = @transform_1, window_bounds = array<i64: 2, 128>}, {pipeline_mode = #tpu.pipeline_mode<synchronous>, transform_indices = @transform_2, window_bounds = array<i64: 1, 1>}]} {
    %c0_i32 = arith.constant 0 : i32
    %0 = arith.cmpi eq, %arg0, %c0_i32 : i32
    %1 = arith.extui %0 : i1 to i32
    %c0_i32_0 = arith.constant 0 : i32
    %2 = arith.cmpi ne, %1, %c0_i32_0 : i32
    scf.if %2 {
      %cst_16 = arith.constant 0.000000e+00 : f32
      %50 = vector.broadcast %cst_16 : f32 to vector<1x1xf32>
      %c0_17 = arith.constant 0 : index
      %c0_18 = arith.constant 0 : index
      %51 = vector.load %arg3[%c0_17, %c0_18] : memref<1x1xf32, #tpu.memory_space<vmem>>, vector<1x1xf32>
      tpu.vector_store %arg3[%c0_17, %c0_18], %50 {strides = array<i32>} : memref<1x1xf32, #tpu.memory_space<vmem>>, vector<1x1xf32>,
    } else {
    }
    %c0 = arith.constant 0 : index
    %c0_1 = arith.constant 0 : index
    %3 = vector.load %arg1[%c0, %c0_1] : memref<2x128xf32, #tpu.memory_space<vmem>>, vector<2x128xf32>
    %c0_2 = arith.constant 0 : index
    %c0_3 = arith.constant 0 : index
    %4 = vector.load %arg2[%c0_2, %c0_3] : memref<2x128xf32, #tpu.memory_space<vmem>>, vector<2x128xf32>
    %5 = vector.extract_strided_slice %3 {offsets = [0, 0], sizes = [1, 128], strides = [1, 1]} : vector<2x128xf32> to vector<1x128xf32>
    %6 = vector.extract_strided_slice %4 {offsets = [0, 0], sizes = [1, 128], strides = [1, 1]} : vector<2x128xf32> to vector<1x128xf32>
    %7 = arith.subf %5, %6 : vector<1x128xf32>
    %8 = vector.extract_strided_slice %3 {offsets = [1, 0], sizes = [1, 128], strides = [1, 1]} : vector<2x128xf32> to vector<1x128xf32>
    %cst = arith.constant 0.0174532924 : f32
    %9 = vector.broadcast %cst : f32 to vector<1x128xf32>
    %10 = arith.mulf %8, %9 : vector<1x128xf32>
    %11 = vector.extract_strided_slice %4 {offsets = [1, 0], sizes = [1, 128], strides = [1, 1]} : vector<2x128xf32> to vector<1x128xf32>
    %12 = math.sin %10 : vector<1x128xf32>
    %13 = math.sin %11 : vector<1x128xf32>
    %cst_4 = arith.constant 0.0174532924 : f32
    %14 = vector.broadcast %cst_4 : f32 to vector<1x128xf32>
    %15 = arith.mulf %13, %14 : vector<1x128xf32>
    %16 = arith.subf %12, %15 : vector<1x128xf32>
    %17 = math.cos %10 : vector<1x128xf32>
    %18 = math.cos %11 : vector<1x128xf32>
    %cst_5 = arith.constant 0.0174532924 : f32
    %19 = vector.broadcast %cst_5 : f32 to vector<1x128xf32>
    %20 = arith.mulf %18, %19 : vector<1x128xf32>
    %21 = arith.subf %17, %20 : vector<1x128xf32>
    %22 = arith.mulf %7, %7 : vector<1x128xf32>
    %cst_6 = arith.constant 1.500000e-01 : f32
    %23 = vector.broadcast %cst_6 : f32 to vector<1x128xf32>
    %24 = arith.mulf %23, %22 : vector<1x128xf32>
    %25 = arith.mulf %16, %16 : vector<1x128xf32>
    %26 = arith.mulf %21, %21 : vector<1x128xf32>
    %27 = arith.addf %25, %26 : vector<1x128xf32>
    %cst_7 = arith.constant 8.500000e-01 : f32
    %28 = vector.broadcast %cst_7 : f32 to vector<1x128xf32>
    %29 = arith.mulf %28, %27 : vector<1x128xf32>
    %30 = arith.addf %24, %29 : vector<1x128xf32>
    %31 = tpu.iota {dimensions = array<i32: 1>} : vector<1x128xi32>
    %c128_i32 = arith.constant 128 : i32
    %32 = arith.muli %arg0, %c128_i32 : i32
    %33 = vector.broadcast %32 : i32 to vector<1x128xi32>
    %34 = arith.addi %31, %33 : vector<1x128xi32>
    %c8_i32 = arith.constant 8 : i32
    %35 = vector.broadcast %c8_i32 : i32 to vector<1x128xi32>
    %36 = arith.cmpi slt, %34, %35 : vector<1x128xi32>
    %cst_8 = arith.constant 0.000000e+00 : f32
    %37 = vector.broadcast %cst_8 : f32 to vector<1x128xf32>
    %38 = arith.select %36, %30, %37 : vector<1x128xi1>, vector<1x128xf32>
    %c0_9 = arith.constant 0 : index
    %c0_10 = arith.constant 0 : index
    %39 = vector.load %arg3[%c0_9, %c0_10] : memref<1x1xf32, #tpu.memory_space<vmem>>, vector<1x1xf32>
    %40 = vector.shape_cast %38 : vector<1x128xf32> to vector<1x1x128xf32>
    %cst_11 = arith.constant dense<0.000000e+00> : vector<1xf32>
    %41 = vector.multi_reduction <add>, %40, %cst_11 [1, 2] : vector<1x1x128xf32> to vector<1xf32>
    %42 = vector.shape_cast %41 : vector<1xf32> to vector<1x1x1xf32>
    %43 = vector.extract %42[0, 0, 0] : f32 from vector<1x1x1xf32>
    %44 = vector.broadcast %43 : f32 to vector<1x1xf32>
    %45 = arith.addf %39, %44 : vector<1x1xf32>
    %c0_12 = arith.constant 0 : index
    %c0_13 = arith.constant 0 : index
    %46 = vector.load %arg3[%c0_12, %c0_13] : memref<1x1xf32, #tpu.memory_space<vmem>>, vector<1x1xf32>
    tpu.vector_store %arg3[%c0_12, %c0_13], %45 {strides = array<i32>} : memref<1x1xf32, #tpu.memory_space<vmem>>, vector<1x1xf32>,
    %c0_i32_14 = arith.constant 0 : i32
    %47 = arith.cmpi eq, %arg0, %c0_i32_14 : i32
    %48 = arith.extui %47 : i1 to i32
    %c0_i32_15 = arith.constant 0 : i32
    %49 = arith.cmpi ne, %48, %c0_i32_15 : i32
    scf.if %49 {
      %c0_16 = arith.constant 0 : index
      %c0_17 = arith.constant 0 : index
      %50 = vector.load %arg3[%c0_16, %c0_17] : memref<1x1xf32, #tpu.memory_space<vmem>>, vector<1x1xf32>
      %cst_18 = arith.constant 1.250000e-02 : f32
      %51 = vector.broadcast %cst_18 : f32 to vector<1x1xf32>
      %52 = arith.mulf %50, %51 : vector<1x1xf32>
      %c0_19 = arith.constant 0 : index
      %c0_20 = arith.constant 0 : index
      %53 = vector.load %arg3[%c0_19, %c0_20] : memref<1x1xf32, #tpu.memory_space<vmem>>, vector<1x1xf32>
      tpu.vector_store %arg3[%c0_19, %c0_20], %52 {strides = array<i32>} : memref<1x1xf32, #tpu.memory_space<vmem>>, vector<1x1xf32>,
    } else {
    }
    return
  }
  func.func @transform_0(%arg0: i32) -> (i32, i32) {
    %c0_i32 = arith.constant 0 : i32
    %c0_i32_0 = arith.constant 0 : i32
    return %c0_i32, %arg0 : i32, i32
  }
  func.func @transform_1(%arg0: i32) -> (i32, i32) {
    %c0_i32 = arith.constant 0 : i32
    %c0_i32_0 = arith.constant 0 : i32
    return %c0_i32, %arg0 : i32, i32
  }
  func.func @transform_2(%arg0: i32) -> (i32, i32) {
    %c0_i32 = arith.constant 0 : i32
    %c0_i32_0 = arith.constant 0 : i32
    %c0_i32_1 = arith.constant 0 : i32
    return %c0_i32, %c0_i32_0 : i32, i32
  }
}

</mosaic_0001>

<llo_original>
// kernel: tpu_custom_call.1
$region0: #{tpu_custom_call.1}
  #allocation0 [shape = 'u32[]', space=smem, size = 0x4, offset = 0x4, fixed_abs, tag = 'smem constant byte address 0x4 - core index']
  #allocation1 [shape = 'u32[72,128]{1,0:T(1,128)}', space=vmem, size = 0x9000, scoped, tag = 'internal scratch']
  %s0 = inlined_call_operand.hbm [shape: f32[2,128], index: 0, kind: input, shape index: {}]
  %s1 = inlined_call_operand.hbm [shape: f32[2,128], index: 1, kind: input, shape index: {}]
  %s2 = inlined_call_operand.hbm [shape: f32[1,1], index: 2, kind: output, shape index: {}]
  %s3 = sld [smem:[#allocation0]]
  $region34: #{tpu_custom_call.1} parent=0
    _
  %s5 = ssub.s32 1, %s3
  %s6 = scalar_select 0, %s5, %s3
  $region1: #{tpu_custom_call.1} parent=0
    #allocation2 [shape = 'u8[1024]{0}', space=vmem, size = 0x400, scoped, tag = 'input window, operand 0, single buffered']
    #allocation3 [shape = 's32[1]{0}', space=sflag, size = 0x4, scoped, tag = 'scoped memory for tpu_custom_call.1']
    #allocation4 [shape = 's32[1]{0}', space=sflag, size = 0x4, scoped, tag = 'scoped memory for tpu_custom_call.1']
    #allocation5 [shape = 'u8[1024]{0}', space=vmem, size = 0x400, scoped, tag = 'input window, operand 1, single buffered']
    #allocation6 [shape = 's32[1]{0}', space=sflag, size = 0x4, scoped, tag = 'scoped memory for tpu_custom_call.1']
    #allocation7 [shape = 'u8[512]{0}', space=vmem, size = 0x400, scoped, tag = 'output window, operand 0, single buffered']
    %7 = vsyncpa [#allocation3], 0
    %8 = vsyncpa [#allocation6], 0
    %9 = vsyncpa [#allocation4], 0
    // Predicated region
    $region2: #{tpu_custom_call.1} parent=1 // pred_check
      _
    $region3: #{tpu_custom_call.1} parent=1 // pred_check_branch
      %11 = sbr.rel (0) target = $region5
    $region4: #{tpu_custom_call.1} parent=1 // pred_region
      %13 = vsyncadd [#allocation3], 0
      %s15 = sshll.u32 %s0, 4
      %s16 = int_to_ptr.hbm [resolvable:$true] %s15
      %s17 = sshll.u32 [#allocation2], 4
      %s18 = int_to_ptr.vmem [resolvable:$true] %s17
      %20 = dma.hbm_to_vmem [thread:$0]  %s16, 32, %s18, [#allocation3]
    $region5: #{tpu_custom_call.1} parent=1 // pred_fallthru
      _
    // Predicated region
    $region6: #{tpu_custom_call.1} parent=1 // pred_check
      _
    $region7: #{tpu_custom_call.1} parent=1 // pred_check_branch
      %22 = sbr.rel (0) target = $region9
    $region8: #{tpu_custom_call.1} parent=1 // pred_region
      %24 = vsyncadd [#allocation6], 0
      %s26 = sshll.u32 %s1, 4
      %s27 = int_to_ptr.hbm [resolvable:$true] %s26
      %s28 = sshll.u32 [#allocation5], 4
      %s29 = int_to_ptr.vmem [resolvable:$true] %s28
      %31 = dma.hbm_to_vmem [thread:$0]  %s27, 32, %s29, [#allocation6]
    $region9: #{tpu_custom_call.1} parent=1 // pred_fallthru
      _
    // Predicated region
    $region10: #{tpu_custom_call.1} parent=1 // pred_check
      _
    $region11: #{tpu_custom_call.1} parent=1 // pred_check_branch
      %33 = sbr.rel (0) target = $region13
    $region12: #{tpu_custom_call.1} parent=1 // pred_region
      %35 = dma.done [#allocation3], 32
    $region13: #{tpu_custom_call.1} parent=1 // pred_fallthru
      _
    // Predicated region
    $region14: #{tpu_custom_call.1} parent=1 // pred_check
      _
    $region15: #{tpu_custom_call.1} parent=1 // pred_check_branch
      %37 = sbr.rel (0) target = $region17
    $region16: #{tpu_custom_call.1} parent=1 // pred_region
      %39 = dma.done [#allocation6], 32
    $region17: #{tpu_custom_call.1} parent=1 // pred_fallthru
      _
    %p40 = scmp.eq.s32.totalorder 0, 0
    // Predicated region
    $region18: #{tpu_custom_call.1} parent=1 // pred_check
      %p41 = pneg %p40
    $region19: #{tpu_custom_call.1} parent=1 // pred_check_branch
      %43 = sbr.rel (%p41) target = $region21
    $region20: #{tpu_custom_call.1} parent=1 // pred_region
      %vm44 = vcmask 0
      %45 = vst.msk [vmem:[#allocation7] sm:$0x1] %vm44, 0.0
    $region21: #{tpu_custom_call.1} parent=1 // pred_fallthru
      _
    %v46 = vld [vmem:[#allocation2] sm:$0x3]
    %v47 = vld [vmem:[#allocation5] sm:$0x3]
    %v48 = vsub.f32 %v46, %v47
    %v49 = vmul.f32 %v46, 0.017453292
    %v50 = vand.u32 2147483647, %v49
    %vm51 = vcmp.le.f32.partialorder %v50, 0.7853982
    %vm52 = vcmp.lt.s32.totalorder %v49, 0
    %v53 = vand.u32 %v49, 2139095040
    %v54 = vshrl.u32 %v53, 23
    %v55 = vsub.s32 %v54, 127
    %v56 = vand.u32 2147483647, %v49
    %v57 = vand.u32 %v56, 8388607
    %v58 = vor.u32 %v57, 8388608
    %v59 = vsub.s32 0, %v58
    %v60 = vadd.s32 %v55, 1
    %vm61 = vcmp.gt.s32.totalorder %v60, 0
    %v62 = vsel %vm61, %v60, 0
    %v63 = vshrl.u32 %v62, 5
    %v64 = vand.u32 %v62, 31
    %v65 = vsub.s32 32, %v64
    %v66 = vshrl.u32 683565275, %v65
    %v67 = vshll.u32 683565275, %v64
    %v68 = vshrl.u32 2475754826, %v65
    %v69 = vor.u32 %v67, %v68
    %v70 = vshll.u32 2475754826, %v64
    %v71 = vshrl.u32 2131351028, %v65
    %v72 = vor.u32 %v70, %v71
    %v73 = vshll.u32 2131351028, %v64
    %v74 = vshrl.u32 2102212464, %v65
    %v75 = vor.u32 %v73, %v74
    %v76 = vshll.u32 2102212464, %v64
    %v77 = vshrl.u32 920167782, %v65
    %v78 = vor.u32 %v76, %v77
    %v79 = vshll.u32 920167782, %v64
    %v80 = vshrl.u32 1326507024, %v65
    %v81 = vor.u32 %v79, %v80
    %vm82 = vcmp.lt.s32.totalorder %v63, 1
    %vm83 = vcmp.lt.s32.totalorder %v63, 2
    %vm84 = vcmp.lt.s32.totalorder %v63, 3
    %vm85 = vcmp.lt.s32.totalorder %v63, 4
    %v86 = vsel %vm82, %v66, %v69
    %v87 = vsel %vm85, %v75, 2102212464
    %v88 = vsel %vm84, %v72, %v87
    %v89 = vsel %vm83, %v86, %v88
    %v90 = vsel %vm82, %v69, %v72
    %v91 = vsel %vm85, %v78, 920167782
    %v92 = vsel %vm84, %v75, %v91
    %v93 = vsel %vm83, %v90, %v92
    %v94 = vsel %vm82, %v72, %v75
    %v95 = vsel %vm85, %v81, 1326507024
    %v96 = vsel %vm84, %v78, %v95
    %v97 = vsel %vm83, %v94, %v96
    %v98 = vshll.u32 %v58, 8
    %v99 = vand.u32 %v98, 65535
    %v100 = vshrl.u32 %v98, 16
    %v101 = vand.u32 %v97, 65535
    %v102 = vshrl.u32 %v97, 16
    %v103 = vmul.u32 %v99, %v101
    %v104 = vmul.u32 %v99, %v102
    %v105 = vmul.u32 %v100, %v101
    %v106 = vmul.u32 %v100, %v102
    %v107 = vshll.u32 %v104, 16
    %v108 = vshrl.u32 %v104, 16
    %v109 = vshll.u32 %v105, 16
    %v110 = vshrl.u32 %v105, 16
    %vm111 = vc.u32 %v103, %v107
    %v112 = vsel %vm111, 1, 0
    %v113 = vadd.s32 %v103, %v107
    %v114 = vadd.s32 %v106, %v112
    %vm115 = vc.u32 %v113, %v109
    %v116 = vsel %vm115, 1, 0
    %v117 = vadd.s32 %v113, %v109
    %v118 = vadd.s32 %v114, %v116
    %v119 = vadd.s32 %v118, %v108
    %v120 = vadd.s32 %v119, %v110
    %v121 = vand.u32 %v98, 65535
    %v122 = vshrl.u32 %v98, 16
    %v123 = vand.u32 %v93, 65535
    %v124 = vshrl.u32 %v93, 16
    %v125 = vmul.u32 %v121, %v123
    %v126 = vmul.u32 %v121, %v124
    %v127 = vmul.u32 %v122, %v123
    %v128 = vmul.u32 %v122, %v124
    %v129 = vshll.u32 %v126, 16
    %v130 = vshrl.u32 %v126, 16
    %v131 = vshll.u32 %v127, 16
    %v132 = vshrl.u32 %v127, 16
    %vm133 = vc.u32 %v125, %v129
    %v134 = vsel %vm133, 1, 0
    %v135 = vadd.s32 %v125, %v129
    %v136 = vadd.s32 %v128, %v134
    %vm137 = vc.u32 %v135, %v131
    %v138 = vsel %vm137, 1, 0
    %v139 = vadd.s32 %v135, %v131
    %v140 = vadd.s32 %v136, %v138
    %v141 = vadd.s32 %v140, %v130
    %v142 = vadd.s32 %v141, %v132
    %v143 = vmul.u32 %v98, %v89
    %v144 = vadd.s32 %v120, %v139
    %vm145 = vc.u32 %v120, %v139
    %v146 = vadd.s32 %v142, 1
    %v147 = vsel %vm145, %v146, %v142
    %v148 = vadd.s32 %v143, %v147
    %v149 = vadd.s32 %v148, 536870912
    %v150 = vshrl.u32 %v149, 30
    %v151 = vshll.u32 %v150, 30
    %v152 = vsub.s32 %v148, %v151
    %vm153 = vcmp.lt.s32.totalorder %v152, 0
    %v154 = vsub.s32 0, %v152
    %v155 = vsel %vm153, %v154, %v152
    %v156 = vclz %v155
    %v157 = vsub.s32 %v156, 2
    %vm158 = vcmp.gt.s32.totalorder 0, %v157
    %v159 = vsel %vm158, 0, %v157
    %v160 = vsub.s32 32, %v159
    %v161 = vshll.u32 %v152, %v159
    %v162 = vshrl.u32 %v144, %v160
    %v163 = vor.u32 %v161, %v162
    %v164 = vsub.s32 4294967266, %v159
    %v165 = vadd.s32 %v164, 127
    %v166 = vshll.u32 %v165, 23
    %v167 = vor.u32 4788187, %v166
    %v168 = vand.u32 2147483647, %v167
    %v170 = vcvt.s32.f32 %v163
    %v171 = vmul.f32 %v170, %v168
    %v172 = vxor.u32 %v171, 2147483648
    %v173 = vsel %vm52, %v172, %v171
    %v174 = vsub.s32 4, %v150
    %v175 = vsel %vm52, %v174, %v150
    %v176 = vsel %vm51, %v49, %v173
    %v177 = vsel %vm51, 0, %v175
    %v178 = vmul.f32 %v176, %v176
    %v179 = vmul.f32 %v178, -0.001358992
    %v180 = vadd.f32 %v179, 0.041655596
    %v181 = vmul.f32 %v178, %v180
    %v182 = vadd.f32 %v181, -0.4999988
    %v183 = vmul.f32 %v178, %v182
    %v184 = vadd.f32 1.0, %v183
    %v185 = vmul.f32 %v176, %v176
    %v186 = vmul.f32 %v185, -0.00019511016
    %v187 = vadd.f32 %v186, 0.008332121
    %v188 = vmul.f32 %v185, %v187
    %v189 = vadd.f32 %v188, -0.16666654
    %v190 = vmul.f32 %v185, %v189
    %v191 = vadd.f32 %v190, 1.0
    %v192 = vmul.f32 %v191, %v176
    %vm193 = vweird.f32 %v49
    %v194 = vadd.s32 %v177, 3
    %v195 = vand.u32 %v194, 3
    %vm196 = vcmp.lt.s32.totalorder %v195, 2
    %vm197 = vcmp.eq.s32.totalorder %v195, 0
    %v198 = vxor.u32 %v192, 2147483648
    %v199 = vsel %vm197, %v184, %v198
    %vm200 = vcmp.eq.s32.totalorder %v195, 2
    %v201 = vxor.u32 %v184, 2147483648
    %v202 = vsel %vm200, %v201, %v192
    %v203 = vsel %vm196, %v199, %v202
    %v204 = vsel %vm193, nan, %v203
    %v205 = vand.u32 2147483647, %v47
    %vm206 = vcmp.le.f32.partialorder %v205, 0.7853982
    %vm207 = vcmp.lt.s32.totalorder %v47, 0
    %v208 = vand.u32 %v47, 2139095040
    %v209 = vshrl.u32 %v208, 23
    %v210 = vsub.s32 %v209, 127
    %v211 = vand.u32 2147483647, %v47
    %v212 = vand.u32 %v211, 8388607
    %v213 = vor.u32 %v212, 8388608
    %v214 = vsub.s32 0, %v213
    %v215 = vadd.s32 %v210, 1
    %vm216 = vcmp.gt.s32.totalorder %v215, 0
    %v217 = vsel %vm216, %v215, 0
    %v218 = vshrl.u32 %v217, 5
    %v219 = vand.u32 %v217, 31
    %v220 = vsub.s32 32, %v219
    %v221 = vshrl.u32 683565275, %v220
    %v222 = vshll.u32 683565275, %v219
    %v223 = vshrl.u32 2475754826, %v220
    %v224 = vor.u32 %v222, %v223
    %v225 = vshll.u32 2475754826, %v219
    %v226 = vshrl.u32 2131351028, %v220
    %v227 = vor.u32 %v225, %v226
    %v228 = vshll.u32 2131351028, %v219
    %v229 = vshrl.u32 2102212464, %v220
    %v230 = vor.u32 %v228, %v229
    %v231 = vshll.u32 2102212464, %v219
    %v232 = vshrl.u32 920167782, %v220
    %v233 = vor.u32 %v231, %v232
    %v234 = vshll.u32 920167782, %v219
    %v235 = vshrl.u32 1326507024, %v220
    %v236 = vor.u32 %v234, %v235
    %vm237 = vcmp.lt.s32.totalorder %v218, 1
    %vm238 = vcmp.lt.s32.totalorder %v218, 2
    %vm239 = vcmp.lt.s32.totalorder %v218, 3
    %vm240 = vcmp.lt.s32.totalorder %v218, 4
    %v241 = vsel %vm237, %v221, %v224
    %v242 = vsel %vm240, %v230, 2102212464
    %v243 = vsel %vm239, %v227, %v242
    %v244 = vsel %vm238, %v241, %v243
    %v245 = vsel %vm237, %v224, %v227
    %v246 = vsel %vm240, %v233, 920167782
    %v247 = vsel %vm239, %v230, %v246
    %v248 = vsel %vm238, %v245, %v247
    %v249 = vsel %vm237, %v227, %v230
    %v250 = vsel %vm240, %v236, 1326507024
    %v251 = vsel %vm239, %v233, %v250
    %v252 = vsel %vm238, %v249, %v251
    %v253 = vshll.u32 %v213, 8
    %v254 = vand.u32 %v253, 65535
    %v255 = vshrl.u32 %v253, 16
    %v256 = vand.u32 %v252, 65535
    %v257 = vshrl.u32 %v252, 16
    %v258 = vmul.u32 %v254, %v256
    %v259 = vmul.u32 %v254, %v257
    %v260 = vmul.u32 %v255, %v256
    %v261 = vmul.u32 %v255, %v257
    %v262 = vshll.u32 %v259, 16
    %v263 = vshrl.u32 %v259, 16
    %v264 = vshll.u32 %v260, 16
    %v265 = vshrl.u32 %v260, 16
    %vm266 = vc.u32 %v258, %v262
    %v267 = vsel %vm266, 1, 0
    %v268 = vadd.s32 %v258, %v262
    %v269 = vadd.s32 %v261, %v267
    %vm270 = vc.u32 %v268, %v264
    %v271 = vsel %vm270, 1, 0
    %v272 = vadd.s32 %v268, %v264
    %v273 = vadd.s32 %v269, %v271
    %v274 = vadd.s32 %v273, %v263
    %v275 = vadd.s32 %v274, %v265
    %v276 = vand.u32 %v253, 65535
    %v277 = vshrl.u32 %v253, 16
    %v278 = vand.u32 %v248, 65535
    %v279 = vshrl.u32 %v248, 16
    %v280 = vmul.u32 %v276, %v278
    %v281 = vmul.u32 %v276, %v279
    %v282 = vmul.u32 %v277, %v278
    %v283 = vmul.u32 %v277, %v279
    %v284 = vshll.u32 %v281, 16
    %v285 = vshrl.u32 %v281, 16
    %v286 = vshll.u32 %v282, 16
    %v287 = vshrl.u32 %v282, 16
    %vm288 = vc.u32 %v280, %v284
    %v289 = vsel %vm288, 1, 0
    %v290 = vadd.s32 %v280, %v284
    %v291 = vadd.s32 %v283, %v289
    %vm292 = vc.u32 %v290, %v286
    %v293 = vsel %vm292, 1, 0
    %v294 = vadd.s32 %v290, %v286
    %v295 = vadd.s32 %v291, %v293
    %v296 = vadd.s32 %v295, %v285
    %v297 = vadd.s32 %v296, %v287
    %v298 = vmul.u32 %v253, %v244
    %v299 = vadd.s32 %v275, %v294
    %vm300 = vc.u32 %v275, %v294
    %v301 = vadd.s32 %v297, 1
    %v302 = vsel %vm300, %v301, %v297
    %v303 = vadd.s32 %v298, %v302
    %v304 = vadd.s32 %v303, 536870912
    %v305 = vshrl.u32 %v304, 30
    %v306 = vshll.u32 %v305, 30
    %v307 = vsub.s32 %v303, %v306
    %vm308 = vcmp.lt.s32.totalorder %v307, 0
    %v309 = vsub.s32 0, %v307
    %v310 = vsel %vm308, %v309, %v307
    %v311 = vclz %v310
    %v312 = vsub.s32 %v311, 2
    %vm313 = vcmp.gt.s32.totalorder 0, %v312
    %v314 = vsel %vm313, 0, %v312
    %v315 = vsub.s32 32, %v314
    %v316 = vshll.u32 %v307, %v314
    %v317 = vshrl.u32 %v299, %v315
    %v318 = vor.u32 %v316, %v317
    %v319 = vsub.s32 4294967266, %v314
    %v320 = vadd.s32 %v319, 127
    %v321 = vshll.u32 %v320, 23
    %v322 = vor.u32 4788187, %v321
    %v323 = vand.u32 2147483647, %v322
    %v325 = vcvt.s32.f32 %v318
    %v326 = vmul.f32 %v325, %v323
    %v327 = vxor.u32 %v326, 2147483648
    %v328 = vsel %vm207, %v327, %v326
    %v329 = vsub.s32 4, %v305
    %v330 = vsel %vm207, %v329, %v305
    %v331 = vsel %vm206, %v47, %v328
    %v332 = vsel %vm206, 0, %v330
    %v333 = vmul.f32 %v331, %v331
    %v334 = vmul.f32 %v333, -0.001358992
    %v335 = vadd.f32 %v334, 0.041655596
    %v336 = vmul.f32 %v333, %v335
    %v337 = vadd.f32 %v336, -0.4999988
    %v338 = vmul.f32 %v333, %v337
    %v339 = vadd.f32 1.0, %v338
    %v340 = vmul.f32 %v331, %v331
    %v341 = vmul.f32 %v340, -0.00019511016
    %v342 = vadd.f32 %v341, 0.008332121
    %v343 = vmul.f32 %v340, %v342
    %v344 = vadd.f32 %v343, -0.16666654
    %v345 = vmul.f32 %v340, %v344
    %v346 = vadd.f32 %v345, 1.0
    %v347 = vmul.f32 %v346, %v331
    %vm348 = vweird.f32 %v47
    %v349 = vadd.s32 %v332, 3
    %v350 = vand.u32 %v349, 3
    %vm351 = vcmp.lt.s32.totalorder %v350, 2
    %vm352 = vcmp.eq.s32.totalorder %v350, 0
    %v353 = vxor.u32 %v347, 2147483648
    %v354 = vsel %vm352, %v339, %v353
    %vm355 = vcmp.eq.s32.totalorder %v350, 2
    %v356 = vxor.u32 %v339, 2147483648
    %v357 = vsel %vm355, %v356, %v347
    %v358 = vsel %vm351, %v354, %v357
    %v359 = vsel %vm348, nan, %v358
    %v360 = vmul.f32 %v359, 0.017453292
    %v361 = vsub.f32 %v204, %v360
    %v362 = vand.u32 2147483647, %v49
    %vm363 = vcmp.le.f32.partialorder %v362, 0.7853982
    %vm364 = vcmp.lt.s32.totalorder %v49, 0
    %v365 = vand.u32 %v49, 2139095040
    %v366 = vshrl.u32 %v365, 23
    %v367 = vsub.s32 %v366, 127
    %v368 = vand.u32 2147483647, %v49
    %v369 = vand.u32 %v368, 8388607
    %v370 = vor.u32 %v369, 8388608
    %v371 = vsub.s32 0, %v370
    %v372 = vadd.s32 %v367, 1
    %vm373 = vcmp.gt.s32.totalorder %v372, 0
    %v374 = vsel %vm373, %v372, 0
    %v375 = vshrl.u32 %v374, 5
    %v376 = vand.u32 %v374, 31
    %v377 = vsub.s32 32, %v376
    %v378 = vshrl.u32 683565275, %v377
    %v379 = vshll.u32 683565275, %v376
    %v380 = vshrl.u32 2475754826, %v377
    %v381 = vor.u32 %v379, %v380
    %v382 = vshll.u32 2475754826, %v376
    %v383 = vshrl.u32 2131351028, %v377
    %v384 = vor.u32 %v382, %v383
    %v385 = vshll.u32 2131351028, %v376
    %v386 = vshrl.u32 2102212464, %v377
    %v387 = vor.u32 %v385, %v386
    %v388 = vshll.u32 2102212464, %v376
    %v389 = vshrl.u32 920167782, %v377
    %v390 = vor.u32 %v388, %v389
    %v391 = vshll.u32 920167782, %v376
    %v392 = vshrl.u32 1326507024, %v377
    %v393 = vor.u32 %v391, %v392
    %vm394 = vcmp.lt.s32.totalorder %v375, 1
    %vm395 = vcmp.lt.s32.totalorder %v375, 2
    %vm396 = vcmp.lt.s32.totalorder %v375, 3
    %vm397 = vcmp.lt.s32.totalorder %v375, 4
    %v398 = vsel %vm394, %v378, %v381
    %v399 = vsel %vm397, %v387, 2102212464
    %v400 = vsel %vm396, %v384, %v399
    %v401 = vsel %vm395, %v398, %v400
    %v402 = vsel %vm394, %v381, %v384
    %v403 = vsel %vm397, %v390, 920167782
    %v404 = vsel %vm396, %v387, %v403
    %v405 = vsel %vm395, %v402, %v404
    %v406 = vsel %vm394, %v384, %v387
    %v407 = vsel %vm397, %v393, 1326507024
    %v408 = vsel %vm396, %v390, %v407
    %v409 = vsel %vm395, %v406, %v408
    %v410 = vshll.u32 %v370, 8
    %v411 = vand.u32 %v410, 65535
    %v412 = vshrl.u32 %v410, 16
    %v413 = vand.u32 %v409, 65535
    %v414 = vshrl.u32 %v409, 16
    %v415 = vmul.u32 %v411, %v413
    %v416 = vmul.u32 %v411, %v414
    %v417 = vmul.u32 %v412, %v413
    %v418 = vmul.u32 %v412, %v414
    %v419 = vshll.u32 %v416, 16
    %v420 = vshrl.u32 %v416, 16
    %v421 = vshll.u32 %v417, 16
    %v422 = vshrl.u32 %v417, 16
    %vm423 = vc.u32 %v415, %v419
    %v424 = vsel %vm423, 1, 0
    %v425 = vadd.s32 %v415, %v419
    %v426 = vadd.s32 %v418, %v424
    %vm427 = vc.u32 %v425, %v421
    %v428 = vsel %vm427, 1, 0
    %v429 = vadd.s32 %v425, %v421
    %v430 = vadd.s32 %v426, %v428
    %v431 = vadd.s32 %v430, %v420
    %v432 = vadd.s32 %v431, %v422
    %v433 = vand.u32 %v410, 65535
    %v434 = vshrl.u32 %v410, 16
    %v435 = vand.u32 %v405, 65535
    %v436 = vshrl.u32 %v405, 16
    %v437 = vmul.u32 %v433, %v435
    %v438 = vmul.u32 %v433, %v436
    %v439 = vmul.u32 %v434, %v435
    %v440 = vmul.u32 %v434, %v436
    %v441 = vshll.u32 %v438, 16
    %v442 = vshrl.u32 %v438, 16
    %v443 = vshll.u32 %v439, 16
    %v444 = vshrl.u32 %v439, 16
    %vm445 = vc.u32 %v437, %v441
    %v446 = vsel %vm445, 1, 0
    %v447 = vadd.s32 %v437, %v441
    %v448 = vadd.s32 %v440, %v446
    %vm449 = vc.u32 %v447, %v443
    %v450 = vsel %vm449, 1, 0
    %v451 = vadd.s32 %v447, %v443
    %v452 = vadd.s32 %v448, %v450
    %v453 = vadd.s32 %v452, %v442
    %v454 = vadd.s32 %v453, %v444
    %v455 = vmul.u32 %v410, %v401
    %v456 = vadd.s32 %v432, %v451
    %vm457 = vc.u32 %v432, %v451
    %v458 = vadd.s32 %v454, 1
    %v459 = vsel %vm457, %v458, %v454
    %v460 = vadd.s32 %v455, %v459
    %v461 = vadd.s32 %v460, 536870912
    %v462 = vshrl.u32 %v461, 30
    %v463 = vshll.u32 %v462, 30
    %v464 = vsub.s32 %v460, %v463
    %vm465 = vcmp.lt.s32.totalorder %v464, 0
    %v466 = vsub.s32 0, %v464
    %v467 = vsel %vm465, %v466, %v464
    %v468 = vclz %v467
    %v469 = vsub.s32 %v468, 2
    %vm470 = vcmp.gt.s32.totalorder 0, %v469
    %v471 = vsel %vm470, 0, %v469
    %v472 = vsub.s32 32, %v471
    %v473 = vshll.u32 %v464, %v471
    %v474 = vshrl.u32 %v456, %v472
    %v475 = vor.u32 %v473, %v474
    %v476 = vsub.s32 4294967266, %v471
    %v477 = vadd.s32 %v476, 127
    %v478 = vshll.u32 %v477, 23
    %v479 = vor.u32 4788187, %v478
    %v480 = vand.u32 2147483647, %v479
    %v482 = vcvt.s32.f32 %v475
    %v483 = vmul.f32 %v482, %v480
    %v484 = vxor.u32 %v483, 2147483648
    %v485 = vsel %vm364, %v484, %v483
    %v486 = vsub.s32 4, %v462
    %v487 = vsel %vm364, %v486, %v462
    %v488 = vsel %vm363, %v49, %v485
    %v489 = vsel %vm363, 0, %v487
    %v490 = vmul.f32 %v488, %v488
    %v491 = vmul.f32 %v490, -0.001358992
    %v492 = vadd.f32 %v491, 0.041655596
    %v493 = vmul.f32 %v490, %v492
    %v494 = vadd.f32 %v493, -0.4999988
    %v495 = vmul.f32 %v490, %v494
    %v496 = vadd.f32 1.0, %v495
    %v497 = vmul.f32 %v488, %v488
    %v498 = vmul.f32 %v497, -0.00019511016
    %v499 = vadd.f32 %v498, 0.008332121
    %v500 = vmul.f32 %v497, %v499
    %v501 = vadd.f32 %v500, -0.16666654
    %v502 = vmul.f32 %v497, %v501
    %v503 = vadd.f32 %v502, 1.0
    %v504 = vmul.f32 %v503, %v488
    %vm505 = vweird.f32 %v49
    %v506 = vand.u32 %v489, 3
    %vm507 = vcmp.lt.s32.totalorder %v506, 2
    %vm508 = vcmp.eq.s32.totalorder %v506, 0
    %v509 = vxor.u32 %v504, 2147483648
    %v510 = vsel %vm508, %v496, %v509
    %vm511 = vcmp.eq.s32.totalorder %v506, 2
    %v512 = vxor.u32 %v496, 2147483648
    %v513 = vsel %vm511, %v512, %v504
    %v514 = vsel %vm507, %v510, %v513
    %v515 = vsel %vm505, nan, %v514
    %v516 = vand.u32 2147483647, %v47
    %vm517 = vcmp.le.f32.partialorder %v516, 0.7853982
    %vm518 = vcmp.lt.s32.totalorder %v47, 0
    %v519 = vand.u32 %v47, 2139095040
    %v520 = vshrl.u32 %v519, 23
    %v521 = vsub.s32 %v520, 127
    %v522 = vand.u32 2147483647, %v47
    %v523 = vand.u32 %v522, 8388607
    %v524 = vor.u32 %v523, 8388608
    %v525 = vsub.s32 0, %v524
    %v526 = vadd.s32 %v521, 1
    %vm527 = vcmp.gt.s32.totalorder %v526, 0
    %v528 = vsel %vm527, %v526, 0
    %v529 = vshrl.u32 %v528, 5
    %v530 = vand.u32 %v528, 31
    %v531 = vsub.s32 32, %v530
    %v532 = vshrl.u32 683565275, %v531
    %v533 = vshll.u32 683565275, %v530
    %v534 = vshrl.u32 2475754826, %v531
    %v535 = vor.u32 %v533, %v534
    %v536 = vshll.u32 2475754826, %v530
    %v537 = vshrl.u32 2131351028, %v531
    %v538 = vor.u32 %v536, %v537
    %v539 = vshll.u32 2131351028, %v530
    %v540 = vshrl.u32 2102212464, %v531
    %v541 = vor.u32 %v539, %v540
    %v542 = vshll.u32 2102212464, %v530
    %v543 = vshrl.u32 920167782, %v531
    %v544 = vor.u32 %v542, %v543
    %v545 = vshll.u32 920167782, %v530
    %v546 = vshrl.u32 1326507024, %v531
    %v547 = vor.u32 %v545, %v546
    %vm548 = vcmp.lt.s32.totalorder %v529, 1
    %vm549 = vcmp.lt.s32.totalorder %v529, 2
    %vm550 = vcmp.lt.s32.totalorder %v529, 3
    %vm551 = vcmp.lt.s32.totalorder %v529, 4
    %v552 = vsel %vm548, %v532, %v535
    %v553 = vsel %vm551, %v541, 2102212464
    %v554 = vsel %vm550, %v538, %v553
    %v555 = vsel %vm549, %v552, %v554
    %v556 = vsel %vm548, %v535, %v538
    %v557 = vsel %vm551, %v544, 920167782
    %v558 = vsel %vm550, %v541, %v557
    %v559 = vsel %vm549, %v556, %v558
    %v560 = vsel %vm548, %v538, %v541
    %v561 = vsel %vm551, %v547, 1326507024
    %v562 = vsel %vm550, %v544, %v561
    %v563 = vsel %vm549, %v560, %v562
    %v564 = vshll.u32 %v524, 8
    %v565 = vand.u32 %v564, 65535
    %v566 = vshrl.u32 %v564, 16
    %v567 = vand.u32 %v563, 65535
    %v568 = vshrl.u32 %v563, 16
    %v569 = vmul.u32 %v565, %v567
    %v570 = vmul.u32 %v565, %v568
    %v571 = vmul.u32 %v566, %v567
    %v572 = vmul.u32 %v566, %v568
    %v573 = vshll.u32 %v570, 16
    %v574 = vshrl.u32 %v570, 16
    %v575 = vshll.u32 %v571, 16
    %v576 = vshrl.u32 %v571, 16
    %vm577 = vc.u32 %v569, %v573
    %v578 = vsel %vm577, 1, 0
    %v579 = vadd.s32 %v569, %v573
    %v580 = vadd.s32 %v572, %v578
    %vm581 = vc.u32 %v579, %v575
    %v582 = vsel %vm581, 1, 0
    %v583 = vadd.s32 %v579, %v575
    %v584 = vadd.s32 %v580, %v582
    %v585 = vadd.s32 %v584, %v574
    %v586 = vadd.s32 %v585, %v576
    %v587 = vand.u32 %v564, 65535
    %v588 = vshrl.u32 %v564, 16
    %v589 = vand.u32 %v559, 65535
    %v590 = vshrl.u32 %v559, 16
    %v591 = vmul.u32 %v587, %v589
    %v592 = vmul.u32 %v587, %v590
    %v593 = vmul.u32 %v588, %v589
    %v594 = vmul.u32 %v588, %v590
    %v595 = vshll.u32 %v592, 16
    %v596 = vshrl.u32 %v592, 16
    %v597 = vshll.u32 %v593, 16
    %v598 = vshrl.u32 %v593, 16
    %vm599 = vc.u32 %v591, %v595
    %v600 = vsel %vm599, 1, 0
    %v601 = vadd.s32 %v591, %v595
    %v602 = vadd.s32 %v594, %v600
    %vm603 = vc.u32 %v601, %v597
    %v604 = vsel %vm603, 1, 0
    %v605 = vadd.s32 %v601, %v597
    %v606 = vadd.s32 %v602, %v604
    %v607 = vadd.s32 %v606, %v596
    %v608 = vadd.s32 %v607, %v598
    %v609 = vmul.u32 %v564, %v555
    %v610 = vadd.s32 %v586, %v605
    %vm611 = vc.u32 %v586, %v605
    %v612 = vadd.s32 %v608, 1
    %v613 = vsel %vm611, %v612, %v608
    %v614 = vadd.s32 %v609, %v613
    %v615 = vadd.s32 %v614, 536870912
    %v616 = vshrl.u32 %v615, 30
    %v617 = vshll.u32 %v616, 30
    %v618 = vsub.s32 %v614, %v617
    %vm619 = vcmp.lt.s32.totalorder %v618, 0
    %v620 = vsub.s32 0, %v618
    %v621 = vsel %vm619, %v620, %v618
    %v622 = vclz %v621
    %v623 = vsub.s32 %v622, 2
    %vm624 = vcmp.gt.s32.totalorder 0, %v623
    %v625 = vsel %vm624, 0, %v623
    %v626 = vsub.s32 32, %v625
    %v627 = vshll.u32 %v618, %v625
    %v628 = vshrl.u32 %v610, %v626
    %v629 = vor.u32 %v627, %v628
    %v630 = vsub.s32 4294967266, %v625
    %v631 = vadd.s32 %v630, 127
    %v632 = vshll.u32 %v631, 23
    %v633 = vor.u32 4788187, %v632
    %v634 = vand.u32 2147483647, %v633
    %v636 = vcvt.s32.f32 %v629
    %v637 = vmul.f32 %v636, %v634
    %v638 = vxor.u32 %v637, 2147483648
    %v639 = vsel %vm518, %v638, %v637
    %v640 = vsub.s32 4, %v616
    %v641 = vsel %vm518, %v640, %v616
    %v642 = vsel %vm517, %v47, %v639
    %v643 = vsel %vm517, 0, %v641
    %v644 = vmul.f32 %v642, %v642
    %v645 = vmul.f32 %v644, -0.001358992
    %v646 = vadd.f32 %v645, 0.041655596
    %v647 = vmul.f32 %v644, %v646
    %v648 = vadd.f32 %v647, -0.4999988
    %v649 = vmul.f32 %v644, %v648
    %v650 = vadd.f32 1.0, %v649
    %v651 = vmul.f32 %v642, %v642
    %v652 = vmul.f32 %v651, -0.00019511016
    %v653 = vadd.f32 %v652, 0.008332121
    %v654 = vmul.f32 %v651, %v653
    %v655 = vadd.f32 %v654, -0.16666654
    %v656 = vmul.f32 %v651, %v655
    %v657 = vadd.f32 %v656, 1.0
    %v658 = vmul.f32 %v657, %v642
    %vm659 = vweird.f32 %v47
    %v660 = vand.u32 %v643, 3
    %vm661 = vcmp.lt.s32.totalorder %v660, 2
    %vm662 = vcmp.eq.s32.totalorder %v660, 0
    %v663 = vxor.u32 %v658, 2147483648
    %v664 = vsel %vm662, %v650, %v663
    %vm665 = vcmp.eq.s32.totalorder %v660, 2
    %v666 = vxor.u32 %v650, 2147483648
    %v667 = vsel %vm665, %v666, %v658
    %v668 = vsel %vm661, %v664, %v667
    %v669 = vsel %vm659, nan, %v668
    %v670 = vmul.f32 %v669, 0.017453292
    %v671 = vsub.f32 %v515, %v670
    %v672 = vmul.f32 %v48, %v48
    %v673 = vmul.f32 %v672, 0.15
    %v674 = vmul.f32 %v361, %v361
    %v675 = vmul.f32 %v671, %v671
    %v676 = vadd.f32 %v674, %v675
    %v677 = vmul.f32 %v676, 0.85
    %v679 = vrot.slane %v677, 1
    %v681 = vadd.f32 %v673, %v679
    %v682 = vlaneseq
    %v683 = vand.u32 %v682, 127
    %s684 = smul.u32 0, 128
    %v685 = vstv %s684
    %v686 = vadd.s32 %v683, %v685
    %vm687 = vcmp.lt.s32.totalorder %v686, 8
    %v688 = vsel %vm687, %v681, 0.0
    %v689 = vld [vmem:[#allocation7] sm:$0x1]
    %vm690 = vcmask 1040384
    %v691 = vsel %vm690, %v688, 0.0
    %692 = vadd.xlane.f32.xlu0 %v691
    %v693 = vpop.xlane.xlu0 %692
    %v694 = vrot.slane %v693, 4
    %v695 = vadd.f32 %v693, %v694
    %v696 = vrot.slane %v695, 2
    %v697 = vadd.f32 %v695, %v696
    %v698 = vrot.slane %v697, 1
    %v699 = vadd.f32 %v697, %v698
    %s700 = vtos %v699
    %v701 = vstv %s700
    %v702 = vadd.f32 %v689, %v701
    %vm703 = vcmask 0
    %704 = vst.msk [vmem:[#allocation7] sm:$0x1] %vm703, %v702
    // Predicated region
    $region22: #{tpu_custom_call.1} parent=1 // pred_check
      %p705 = pneg %p40
    $region23: #{tpu_custom_call.1} parent=1 // pred_check_branch
      %707 = sbr.rel (%p705) target = $region25
    $region24: #{tpu_custom_call.1} parent=1 // pred_region
      %v708 = vld [vmem:[#allocation7] sm:$0x1]
      %v709 = vmul.f32 %v708, 0.0125
      %710 = vst.msk [vmem:[#allocation7] sm:$0x1] %vm703, %v709
    $region25: #{tpu_custom_call.1} parent=1 // pred_fallthru
      _
    // Predicated region
    $region26: #{tpu_custom_call.1} parent=1 // pred_check
      _
    $region27: #{tpu_custom_call.1} parent=1 // pred_check_branch
      %712 = sbr.rel (0) target = $region29
    $region28: #{tpu_custom_call.1} parent=1 // pred_region
      %714 = vsyncadd [#allocation4], 0
      %s716 = sshll.u32 [#allocation7], 4
      %s717 = int_to_ptr.vmem [resolvable:$true] %s716
      %s718 = sshll.u32 %s2, 4
      %s719 = int_to_ptr.hbm [resolvable:$true] %s718
      %721 = dma.vmem_to_hbm [thread:$0]  %s717, 16, %s719, [#allocation4]
    $region29: #{tpu_custom_call.1} parent=1 // pred_fallthru
      _
    // Predicated region
    $region30: #{tpu_custom_call.1} parent=1 // pred_check
      _
    $region31: #{tpu_custom_call.1} parent=1 // pred_check_branch
      %723 = sbr.rel (0) target = $region33
    $region32: #{tpu_custom_call.1} parent=1 // pred_region
      %725 = dma.done [#allocation4], 16
    $region33: #{tpu_custom_call.1} parent=1 // pred_fallthru
      _
    %726 = vsyncpa [#allocation3], 1
    %727 = vsyncpa [#allocation6], 1
    %728 = vsyncpa [#allocation4], 1

</llo_original>
